<compile_context>
chip_gen: v5e
topology: v5e:2x2
jax: 0.10.0
libtpu: 0.0.40
codegen_flags: <defaults>
</compile_context>

<pallas_src>
import functools

import jax
import jax.numpy as jnp
from jax import lax
from jax.experimental import pallas as pl
from jax.experimental.pallas import tpu as pltpu


def _attention_kernel(x_ref, wq_ref, wkv_ref, wproj_ref, bproj_ref,
                      o_ref, kv_ref, q_ref, acc_ref, *,
                      H, dh, C, tq, n_valid, n_pad, group):
    # x_ref:     (1, n_pad, C) bf16   full (padded) token sequence of batch b
    # wq_ref:    (C, C)        bf16   q weight (transposed, scale pre-folded)
    # wkv_ref:   (C, 2C)       bf16   k,v weight (transposed)
    # wproj_ref: (C, C)        bf16   proj weight (transposed)
    # bproj_ref: (1, C)        f32    proj bias
    # o_ref:     (1, tq, C)           output tile
    # kv_ref:    (n_pad, 2C)   bf16   persistent per-batch K/V projection
    # q_ref:     (tq, C)       bf16   this tile's Q projection
    # acc_ref:   (tq, C)       bf16   concatenated head outputs
    i = pl.program_id(1)

    # --- K/V projection: hoisted out of the query-tile axis (once per b) ---
    @pl.when(i == 0)
    def _():
        kv_ref[...] = jnp.dot(
            x_ref[0], wkv_ref[...],
            preferred_element_type=jnp.float32).astype(jnp.bfloat16)

    # --- Q projection for this query tile (sliced from the single x block) ---
    start = pl.multiple_of(i * tq, tq)
    xq = x_ref[0, pl.ds(start, tq), :]                        # (tq, C) bf16
    q_ref[...] = jnp.dot(                                     # scale pre-folded
        xq, wq_ref[...],
        preferred_element_type=jnp.float32).astype(jnp.bfloat16)

    # Bias for padded key positions (traced only when padding exists).
    if n_pad > n_valid:
        key_ids = lax.broadcasted_iota(jnp.int32, (1, n_pad), 1)
        pad_bias = jnp.where(key_ids < n_valid,
                             jnp.float32(0.0), jnp.float32(-1e30))
    else:
        pad_bias = None

    # --- per-head attention in 128-lane head groups (lane-aligned slices) ---
    gc = group * dh
    for g0 in range(0, H, group):
        lo = g0 * dh
        q_g = q_ref[:, lo:lo + gc]                            # (tq, gc)   bf16
        k_g = kv_ref[:, lo:lo + gc]                           # (n_pad, gc) bf16
        v_g = kv_ref[:, C + lo:C + lo + gc]                   # (n_pad, gc) bf16

        outs = []
        for h in range(group):
            hl = h * dh
            # s[n, m] = sum_d q[n, d] * k[m, d] (no transpose materialized)
            s = lax.dot_general(q_g[:, hl:hl + dh], k_g[:, hl:hl + dh],
                                (((1,), (1,)), ((), ())),
                                preferred_element_type=jnp.float32)  # (tq, n_pad)
            if pad_bias is not None:
                s = s + pad_bias

            # numerically stable softmax (f32 on VPU, recip on EUP)
            m = jnp.max(s, axis=-1, keepdims=True)
            p = jnp.exp(s - m)
            p = p * pl.reciprocal(jnp.sum(p, axis=-1, keepdims=True),
                                  approx=True)
            # attention dropout (p=0.1) is identity in eval mode.

            outs.append(jnp.dot(p.astype(jnp.bfloat16), v_g[:, hl:hl + dh],
                                preferred_element_type=jnp.float32))
        o_g = outs[0] if group == 1 else jnp.concatenate(outs, axis=-1)
        acc_ref[:, lo:lo + gc] = o_g.astype(jnp.bfloat16)     # lane-aligned store

    # --- output projection from the lane-dense (tq, C) scratch ---
    out = jnp.dot(acc_ref[...], wproj_ref[...],
                  preferred_element_type=jnp.float32) + bproj_ref[...]
    o_ref[0] = out.astype(o_ref.dtype)


def vit_attention(x, wqkv, wproj, bproj, *, num_heads):
    """x: (B, N, C); wqkv: (3C, C); wproj: (C, C); bproj: (C,). Eval-mode."""
    B, N, C = x.shape
    assert C % num_heads == 0
    dh = C // num_heads
    scale = float(C) ** (-0.5)   # NOTE: module scales by embed_dim, not head_dim

    # Head-group size so that group*dh slices/stores sit on 128-lane boundaries
    # (pairs for ViT's dh=64); fall back to whole-H groups for tiny dh.
    group = max(1, min(num_heads, 128 // max(dh, 1)))
    while num_heads % group:
        group -= 1

    # Query tiling / sequence padding: pad N to a multiple of 128 for ViT-like
    # sequence lengths so query tiles and MXU contractions are full-shaped;
    # small sequences keep N as-is (full-extent blocks are always legal).
    if N >= 128:
        tq = 128
        n_pad = ((N + tq - 1) // tq) * tq
    else:
        tq = N
        n_pad = N

    # Host-side weight prep: transpose (torch Linear computes x @ W.T), fold
    # the softmax scale into the q columns, cast to bf16 for the MXU.
    wq_t = (wqkv[:C, :].T * scale).astype(jnp.bfloat16)       # (C, C)
    wkv_t = wqkv[C:, :].T.astype(jnp.bfloat16)                # (C, 2C)
    wproj_t = wproj.T.astype(jnp.bfloat16)                    # (C, C)
    bproj2 = bproj.reshape(1, C).astype(jnp.float32)          # (1, C)

    x_bf = x.astype(jnp.bfloat16)
    if n_pad != N:
        x_bf = jnp.pad(x_bf, ((0, 0), (0, n_pad - N), (0, 0)))

    grid = (B, n_pad // tq)
    kernel = functools.partial(_attention_kernel, H=num_heads, dh=dh, C=C,
                               tq=tq, n_valid=N, n_pad=n_pad, group=group)

    # VMEM footprint estimate (bytes) -> per-generation-safe limit
    # (40 MiB floor is comfortable even on v7x's 64 MiB physical VMEM).
    out_itemsize = jnp.dtype(x.dtype).itemsize
    footprint = (
        2 * n_pad * C * 2                                   # x block (dbl-buffered, bf16)
        + (C * C + C * 2 * C + C * C) * 2 + C * 4           # weights (Buffered(1)) + bias
        + n_pad * 2 * C * 2                                 # kv scratch (bf16)
        + 2 * tq * C * 2                                    # q + acc scratch (bf16)
        + 2 * tq * C * out_itemsize                         # out block (dbl-buffered)
        + 4 * tq * max(n_pad, C) * 4                        # f32 intermediates headroom
    )
    vmem_limit = int(min(96 * 1024 * 1024,
                         max(40 * 1024 * 1024, 2 * footprint)))

    invariant = dict(pipeline_mode=pl.Buffered(buffer_count=1))

    out = pl.pallas_call(
        kernel,
        out_shape=jax.ShapeDtypeStruct((B, n_pad, C), x.dtype),
        grid_spec=pltpu.PrefetchScalarGridSpec(
            num_scalar_prefetch=0,
            grid=grid,
            in_specs=[
                pl.BlockSpec((1, n_pad, C), lambda b, i: (b, 0, 0)),  # x (full seq)
                pl.BlockSpec((C, C), lambda b, i: (0, 0), **invariant),      # wq^T*scale
                pl.BlockSpec((C, 2 * C), lambda b, i: (0, 0), **invariant),  # wkv^T
                pl.BlockSpec((C, C), lambda b, i: (0, 0), **invariant),      # wproj^T
                pl.BlockSpec((1, C), lambda b, i: (0, 0), **invariant),      # bproj
            ],
            out_specs=pl.BlockSpec((1, tq, C), lambda b, i: (b, i, 0)),
            scratch_shapes=[
                pltpu.VMEM((n_pad, 2 * C), jnp.bfloat16),   # kv (per-batch, persistent)
                pltpu.VMEM((tq, C), jnp.bfloat16),          # q tile
                pltpu.VMEM((tq, C), jnp.bfloat16),          # concatenated head outputs
            ],
        ),
        compiler_params=pltpu.CompilerParams(
            # axis 1 carries the hoisted kv scratch across query tiles, so it
            # must stay "arbitrary"; batch stays parallel for megacore / v7x.
            dimension_semantics=("parallel", "arbitrary"),
            vmem_limit_bytes=vmem_limit,
        ),
    )(x_bf, wq_t, wkv_t, wproj_t, bproj2)

    if n_pad != N:
        out = out[:, :N, :]
    return out


def _reference(x, wqkv, wproj, bproj, *, num_heads):
    B, N, C = x.shape
    dh = C // num_heads
    qkv = (x @ wqkv.T).reshape(B, N, 3, num_heads, dh).transpose(2, 0, 3, 1, 4)
    q, k, v = qkv[0], qkv[1], qkv[2]
    attn = (q @ jnp.swapaxes(k, -2, -1)) * (float(C) ** (-0.5))
    attn = jax.nn.softmax(attn, axis=-1)
    out = (attn @ v).transpose(0, 2, 1, 3).reshape(B, N, C)
    return out @ wproj.T + bproj


if __name__ == "__main__":
    B, N, C, H = 2, 8, 32, 4

    key = jax.random.PRNGKey(0)
    kx, kqkv, kproj, kbias = jax.random.split(key, 4)

    x = jax.random.normal(kx, (B, N, C), dtype=jnp.float32)
    # torch.nn.Linear weight shapes: qkv (3C, C), proj (C, C), proj bias (C,)
    wqkv = jax.random.normal(kqkv, (3 * C, C), dtype=jnp.float32) * 0.02
    wproj = jax.random.normal(kproj, (C, C), dtype=jnp.float32) * 0.02
    bproj = jax.random.normal(kbias, (C,), dtype=jnp.float32) * 0.02

    out = vit_attention(x, wqkv, wproj, bproj, num_heads=H)
    out = jax.block_until_ready(out)

    ref = _reference(x, wqkv, wproj, bproj, num_heads=H)
    assert out.shape == (B, N, C)
    # bf16 MXU operands + approx reciprocal => loosened tolerance vs f32 ref.
    assert jnp.allclose(out, ref, atol=1e-2, rtol=1e-2), "mismatch vs reference"

    print("KERNEL_OK")
</pallas_src>

<mosaic_0001>
module attributes {stable_mosaic.version = 11 : i64} {
  func.func @_attention_kernel(%arg0: i32, %arg1: i32, %arg2: memref<1x8x32xbf16, #tpu.memory_space<vmem>>, %arg3: memref<32x32xbf16, #tpu.memory_space<vmem>>, %arg4: memref<32x64xbf16, #tpu.memory_space<vmem>>, %arg5: memref<32x32xbf16, #tpu.memory_space<vmem>>, %arg6: memref<1x32xf32, #tpu.memory_space<vmem>>, %arg7: memref<1x8x32xf32, #tpu.memory_space<vmem>>, %arg8: memref<8x64xbf16, #tpu.memory_space<vmem>>, %arg9: memref<8x32xbf16, #tpu.memory_space<vmem>>, %arg10: memref<8x32xbf16, #tpu.memory_space<vmem>>) attributes {dimension_semantics = [#tpu.dimension_semantics<parallel>, #tpu.dimension_semantics<arbitrary>], iteration_bounds = array<i64: 2, 1>, scalar_prefetch = 0 : i64, scratch_operands = 3 : i64, tpu.core_type = #tpu.core_type<tc>, window_params = [{transform_indices = @transform_0, window_bounds = array<i64: 1, 8, 32>}, {pipeline_mode = #tpu.pipeline_mode<synchronous>, transform_indices = @transform_1, window_bounds = array<i64: 32, 32>}, {pipeline_mode = #tpu.pipeline_mode<synchronous>, transform_indices = @transform_2, window_bounds = array<i64: 32, 64>}, {pipeline_mode = #tpu.pipeline_mode<synchronous>, transform_indices = @transform_3, window_bounds = array<i64: 32, 32>}, {pipeline_mode = #tpu.pipeline_mode<synchronous>, transform_indices = @transform_4, window_bounds = array<i64: 1, 32>}, {transform_indices = @transform_5, window_bounds = array<i64: 1, 8, 32>}]} {
    %c0_i32 = arith.constant 0 : i32
    %0 = arith.cmpi eq, %arg1, %c0_i32 : i32
    %1 = arith.extui %0 : i1 to i32
    %c0_i32_0 = arith.constant 0 : i32
    %2 = arith.cmpi ne, %1, %c0_i32_0 : i32
    scf.if %2 {
      %c0_39 = arith.constant 0 : index
      %c0_40 = arith.constant 0 : index
      %c0_41 = arith.constant 0 : index
      %91 = vector.load %arg2[%c0_39, %c0_40, %c0_41] : memref<1x8x32xbf16, #tpu.memory_space<vmem>>, vector<1x8x32xbf16>
      %92 = vector.shape_cast %91 : vector<1x8x32xbf16> to vector<8x32xbf16>
      %c0_42 = arith.constant 0 : index
      %c0_43 = arith.constant 0 : index
      %93 = vector.load %arg4[%c0_42, %c0_43] : memref<32x64xbf16, #tpu.memory_space<vmem>>, vector<32x64xbf16>
      %cst_44 = arith.constant dense<0.000000e+00> : vector<8x64xf32>
      %94 = tpu.matmul %92, %93, %cst_44 {dimension_numbers = #tpu.dot_dimension_numbers<[1], [0], [0], [1], [0, 0, 1, 1], [], []>} : vector<8x32xbf16>, vector<32x64xbf16>, vector<8x64xf32> -> vector<8x64xf32>
      %95 = arith.truncf %94 : vector<8x64xf32> to vector<8x64xbf16>
      %c0_45 = arith.constant 0 : index
      %c0_46 = arith.constant 0 : index
      %96 = vector.load %arg8[%c0_45, %c0_46] : memref<8x64xbf16, #tpu.memory_space<vmem>>, vector<8x64xbf16>
      tpu.vector_store %arg8[%c0_45, %c0_46], %95 {strides = array<i32>} : memref<8x64xbf16, #tpu.memory_space<vmem>>, vector<8x64xbf16>,
    } else {
    }
    %c8_i32 = arith.constant 8 : i32
    %3 = arith.muli %arg1, %c8_i32 : i32
    %4 = tpu.assume_multiple %3, 8 : i32
    %c0 = arith.constant 0 : index
    %5 = arith.index_cast %4 : i32 to index
    %c0_1 = arith.constant 0 : index
    %6 = vector.load %arg2[%c0, %5, %c0_1] : memref<1x8x32xbf16, #tpu.memory_space<vmem>>, vector<1x8x32xbf16>
    %7 = vector.shape_cast %6 : vector<1x8x32xbf16> to vector<8x32xbf16>
    %c0_2 = arith.constant 0 : index
    %c0_3 = arith.constant 0 : index
    %8 = vector.load %arg3[%c0_2, %c0_3] : memref<32x32xbf16, #tpu.memory_space<vmem>>, vector<32x32xbf16>
    %cst = arith.constant dense<0.000000e+00> : vector<8x32xf32>
    %9 = tpu.matmul %7, %8, %cst {dimension_numbers = #tpu.dot_dimension_numbers<[1], [0], [0], [1], [0, 0, 1, 1], [], []>} : vector<8x32xbf16>, vector<32x32xbf16>, vector<8x32xf32> -> vector<8x32xf32>
    %10 = arith.truncf %9 : vector<8x32xf32> to vector<8x32xbf16>
    %c0_4 = arith.constant 0 : index
    %c0_5 = arith.constant 0 : index
    %11 = vector.load %arg9[%c0_4, %c0_5] : memref<8x32xbf16, #tpu.memory_space<vmem>>, vector<8x32xbf16>
    tpu.vector_store %arg9[%c0_4, %c0_5], %10 {strides = array<i32>} : memref<8x32xbf16, #tpu.memory_space<vmem>>, vector<8x32xbf16>,
    %c0_6 = arith.constant 0 : index
    %c0_7 = arith.constant 0 : index
    %12 = vector.load %arg9[%c0_6, %c0_7] : memref<8x32xbf16, #tpu.memory_space<vmem>>, vector<8x32xbf16>
    %c0_8 = arith.constant 0 : index
    %c0_9 = arith.constant 0 : index
    %13 = vector.load %arg8[%c0_8, %c0_9] : memref<8x64xbf16, #tpu.memory_space<vmem>>, vector<8x32xbf16>
    %c0_10 = arith.constant 0 : index
    %c32 = arith.constant 32 : index
    %14 = vector.load %arg8[%c0_10, %c32] : memref<8x64xbf16, #tpu.memory_space<vmem>>, vector<8x32xbf16>
    %15 = vector.extract_strided_slice %12 {offsets = [0, 0], sizes = [8, 8], strides = [1, 1]} : vector<8x32xbf16> to vector<8x8xbf16>
    %16 = vector.extract_strided_slice %13 {offsets = [0, 0], sizes = [8, 8], strides = [1, 1]} : vector<8x32xbf16> to vector<8x8xbf16>
    %cst_11 = arith.constant dense<0.000000e+00> : vector<8x8xf32>
    %17 = tpu.matmul %15, %16, %cst_11 {dimension_numbers = #tpu.dot_dimension_numbers<[1], [1], [0], [0], [0, 0, 1, 0], [], []>} : vector<8x8xbf16>, vector<8x8xbf16>, vector<8x8xf32> -> vector<8x8xf32>
    %cst_12 = arith.constant dense<0xFF800000> : vector<8xf32>
    %18 = vector.multi_reduction <maximumf>, %17, %cst_12 [1] : vector<8x8xf32> to vector<8xf32>
    %19 = vector.shape_cast %18 : vector<8xf32> to vector<8x1xf32>
    %20 = vector.broadcast %19 : vector<8x1xf32> to vector<8x8xf32>
    %21 = arith.subf %17, %20 : vector<8x8xf32>
    %22 = math.exp %21 : vector<8x8xf32>
    %cst_13 = arith.constant dense<0.000000e+00> : vector<8xf32>
    %23 = vector.multi_reduction <add>, %22, %cst_13 [1] : vector<8x8xf32> to vector<8xf32>
    %24 = vector.shape_cast %23 : vector<8xf32> to vector<8x1xf32>
    %25 = tpu.reciprocal %24 {approx = true} : vector<8x1xf32> -> vector<8x1xf32>
    %26 = vector.broadcast %25 : vector<8x1xf32> to vector<8x8xf32>
    %27 = arith.mulf %22, %26 : vector<8x8xf32>
    %28 = arith.truncf %27 : vector<8x8xf32> to vector<8x8xbf16>
    %29 = vector.extract_strided_slice %14 {offsets = [0, 0], sizes = [8, 8], strides = [1, 1]} : vector<8x32xbf16> to vector<8x8xbf16>
    %cst_14 = arith.constant dense<0.000000e+00> : vector<8x8xf32>
    %30 = tpu.matmul %28, %29, %cst_14 {dimension_numbers = #tpu.dot_dimension_numbers<[1], [0], [0], [1], [0, 0, 1, 1], [], []>} : vector<8x8xbf16>, vector<8x8xbf16>, vector<8x8xf32> -> vector<8x8xf32>
    %31 = vector.extract_strided_slice %12 {offsets = [0, 8], sizes = [8, 8], strides = [1, 1]} : vector<8x32xbf16> to vector<8x8xbf16>
    %32 = vector.extract_strided_slice %13 {offsets = [0, 8], sizes = [8, 8], strides = [1, 1]} : vector<8x32xbf16> to vector<8x8xbf16>
    %cst_15 = arith.constant dense<0.000000e+00> : vector<8x8xf32>
    %33 = tpu.matmul %31, %32, %cst_15 {dimension_numbers = #tpu.dot_dimension_numbers<[1], [1], [0], [0], [0, 0, 1, 0], [], []>} : vector<8x8xbf16>, vector<8x8xbf16>, vector<8x8xf32> -> vector<8x8xf32>
    %cst_16 = arith.constant dense<0xFF800000> : vector<8xf32>
    %34 = vector.multi_reduction <maximumf>, %33, %cst_16 [1] : vector<8x8xf32> to vector<8xf32>
    %35 = vector.shape_cast %34 : vector<8xf32> to vector<8x1xf32>
    %36 = vector.broadcast %35 : vector<8x1xf32> to vector<8x8xf32>
    %37 = arith.subf %33, %36 : vector<8x8xf32>
    %38 = math.exp %37 : vector<8x8xf32>
    %cst_17 = arith.constant dense<0.000000e+00> : vector<8xf32>
    %39 = vector.multi_reduction <add>, %38, %cst_17 [1] : vector<8x8xf32> to vector<8xf32>
    %40 = vector.shape_cast %39 : vector<8xf32> to vector<8x1xf32>
    %41 = tpu.reciprocal %40 {approx = true} : vector<8x1xf32> -> vector<8x1xf32>
    %42 = vector.broadcast %41 : vector<8x1xf32> to vector<8x8xf32>
    %43 = arith.mulf %38, %42 : vector<8x8xf32>
    %44 = arith.truncf %43 : vector<8x8xf32> to vector<8x8xbf16>
    %45 = vector.extract_strided_slice %14 {offsets = [0, 8], sizes = [8, 8], strides = [1, 1]} : vector<8x32xbf16> to vector<8x8xbf16>
    %cst_18 = arith.constant dense<0.000000e+00> : vector<8x8xf32>
    %46 = tpu.matmul %44, %45, %cst_18 {dimension_numbers = #tpu.dot_dimension_numbers<[1], [0], [0], [1], [0, 0, 1, 1], [], []>} : vector<8x8xbf16>, vector<8x8xbf16>, vector<8x8xf32> -> vector<8x8xf32>
    %47 = vector.extract_strided_slice %12 {offsets = [0, 16], sizes = [8, 8], strides = [1, 1]} : vector<8x32xbf16> to vector<8x8xbf16>
    %48 = vector.extract_strided_slice %13 {offsets = [0, 16], sizes = [8, 8], strides = [1, 1]} : vector<8x32xbf16> to vector<8x8xbf16>
    %cst_19 = arith.constant dense<0.000000e+00> : vector<8x8xf32>
    %49 = tpu.matmul %47, %48, %cst_19 {dimension_numbers = #tpu.dot_dimension_numbers<[1], [1], [0], [0], [0, 0, 1, 0], [], []>} : vector<8x8xbf16>, vector<8x8xbf16>, vector<8x8xf32> -> vector<8x8xf32>
    %cst_20 = arith.constant dense<0xFF800000> : vector<8xf32>
    %50 = vector.multi_reduction <maximumf>, %49, %cst_20 [1] : vector<8x8xf32> to vector<8xf32>
    %51 = vector.shape_cast %50 : vector<8xf32> to vector<8x1xf32>
    %52 = vector.broadcast %51 : vector<8x1xf32> to vector<8x8xf32>
    %53 = arith.subf %49, %52 : vector<8x8xf32>
    %54 = math.exp %53 : vector<8x8xf32>
    %cst_21 = arith.constant dense<0.000000e+00> : vector<8xf32>
    %55 = vector.multi_reduction <add>, %54, %cst_21 [1] : vector<8x8xf32> to vector<8xf32>
    %56 = vector.shape_cast %55 : vector<8xf32> to vector<8x1xf32>
    %57 = tpu.reciprocal %56 {approx = true} : vector<8x1xf32> -> vector<8x1xf32>
    %58 = vector.broadcast %57 : vector<8x1xf32> to vector<8x8xf32>
    %59 = arith.mulf %54, %58 : vector<8x8xf32>
    %60 = arith.truncf %59 : vector<8x8xf32> to vector<8x8xbf16>
    %61 = vector.extract_strided_slice %14 {offsets = [0, 16], sizes = [8, 8], strides = [1, 1]} : vector<8x32xbf16> to vector<8x8xbf16>
    %cst_22 = arith.constant dense<0.000000e+00> : vector<8x8xf32>
    %62 = tpu.matmul %60, %61, %cst_22 {dimension_numbers = #tpu.dot_dimension_numbers<[1], [0], [0], [1], [0, 0, 1, 1], [], []>} : vector<8x8xbf16>, vector<8x8xbf16>, vector<8x8xf32> -> vector<8x8xf32>
    %63 = vector.extract_strided_slice %12 {offsets = [0, 24], sizes = [8, 8], strides = [1, 1]} : vector<8x32xbf16> to vector<8x8xbf16>
    %64 = vector.extract_strided_slice %13 {offsets = [0, 24], sizes = [8, 8], strides = [1, 1]} : vector<8x32xbf16> to vector<8x8xbf16>
    %cst_23 = arith.constant dense<0.000000e+00> : vector<8x8xf32>
    %65 = tpu.matmul %63, %64, %cst_23 {dimension_numbers = #tpu.dot_dimension_numbers<[1], [1], [0], [0], [0, 0, 1, 0], [], []>} : vector<8x8xbf16>, vector<8x8xbf16>, vector<8x8xf32> -> vector<8x8xf32>
    %cst_24 = arith.constant dense<0xFF800000> : vector<8xf32>
    %66 = vector.multi_reduction <maximumf>, %65, %cst_24 [1] : vector<8x8xf32> to vector<8xf32>
    %67 = vector.shape_cast %66 : vector<8xf32> to vector<8x1xf32>
    %68 = vector.broadcast %67 : vector<8x1xf32> to vector<8x8xf32>
    %69 = arith.subf %65, %68 : vector<8x8xf32>
    %70 = math.exp %69 : vector<8x8xf32>
    %cst_25 = arith.constant dense<0.000000e+00> : vector<8xf32>
    %71 = vector.multi_reduction <add>, %70, %cst_25 [1] : vector<8x8xf32> to vector<8xf32>
    %72 = vector.shape_cast %71 : vector<8xf32> to vector<8x1xf32>
    %73 = tpu.reciprocal %72 {approx = true} : vector<8x1xf32> -> vector<8x1xf32>
    %74 = vector.broadcast %73 : vector<8x1xf32> to vector<8x8xf32>
    %75 = arith.mulf %70, %74 : vector<8x8xf32>
    %76 = arith.truncf %75 : vector<8x8xf32> to vector<8x8xbf16>
    %77 = vector.extract_strided_slice %14 {offsets = [0, 24], sizes = [8, 8], strides = [1, 1]} : vector<8x32xbf16> to vector<8x8xbf16>
    %cst_26 = arith.constant dense<0.000000e+00> : vector<8x8xf32>
    %78 = tpu.matmul %76, %77, %cst_26 {dimension_numbers = #tpu.dot_dimension_numbers<[1], [0], [0], [1], [0, 0, 1, 1], [], []>} : vector<8x8xbf16>, vector<8x8xbf16>, vector<8x8xf32> -> vector<8x8xf32>
    %79 = tpu.concatenate %30, %46, %62, %78 in 1 : vector<8x8xf32>, vector<8x8xf32>, vector<8x8xf32>, vector<8x8xf32> -> vector<8x32xf32>
    %80 = arith.truncf %79 : vector<8x32xf32> to vector<8x32xbf16>
    %c0_27 = arith.constant 0 : index
    %c0_28 = arith.constant 0 : index
    %81 = vector.load %arg10[%c0_27, %c0_28] : memref<8x32xbf16, #tpu.memory_space<vmem>>, vector<8x32xbf16>
    tpu.vector_store %arg10[%c0_27, %c0_28], %80 {strides = array<i32>} : memref<8x32xbf16, #tpu.memory_space<vmem>>, vector<8x32xbf16>,
    %c0_29 = arith.constant 0 : index
    %c0_30 = arith.constant 0 : index
    %82 = vector.load %arg10[%c0_29, %c0_30] : memref<8x32xbf16, #tpu.memory_space<vmem>>, vector<8x32xbf16>
    %c0_31 = arith.constant 0 : index
    %c0_32 = arith.constant 0 : index
    %83 = vector.load %arg5[%c0_31, %c0_32] : memref<32x32xbf16, #tpu.memory_space<vmem>>, vector<32x32xbf16>
    %cst_33 = arith.constant dense<0.000000e+00> : vector<8x32xf32>
    %84 = tpu.matmul %82, %83, %cst_33 {dimension_numbers = #tpu.dot_dimension_numbers<[1], [0], [0], [1], [0, 0, 1, 1], [], []>} : vector<8x32xbf16>, vector<32x32xbf16>, vector<8x32xf32> -> vector<8x32xf32>
    %c0_34 = arith.constant 0 : index
    %c0_35 = arith.constant 0 : index
    %85 = vector.load %arg6[%c0_34, %c0_35] : memref<1x32xf32, #tpu.memory_space<vmem>>, vector<1x32xf32>
    %86 = vector.broadcast %85 : vector<1x32xf32> to vector<8x32xf32>
    %87 = arith.addf %84, %86 : vector<8x32xf32>
    %c0_36 = arith.constant 0 : index
    %c0_37 = arith.constant 0 : index
    %c0_38 = arith.constant 0 : index
    %88 = vector.load %arg7[%c0_36, %c0_37, %c0_38] : memref<1x8x32xf32, #tpu.memory_space<vmem>>, vector<1x8x32xf32>
    %89 = vector.shape_cast %88 : vector<1x8x32xf32> to vector<8x32xf32>
    %90 = vector.shape_cast %87 : vector<8x32xf32> to vector<1x8x32xf32>
    tpu.vector_store %arg7[%c0_36, %c0_37, %c0_38], %90 {strides = array<i32>} : memref<1x8x32xf32, #tpu.memory_space<vmem>>, vector<1x8x32xf32>,
    return
  }
  func.func @transform_0(%arg0: i32, %arg1: i32) -> (i32, i32, i32) {
    %c0_i32 = arith.constant 0 : i32
    %c0_i32_0 = arith.constant 0 : i32
    %c0_i32_1 = arith.constant 0 : i32
    return %arg0, %c0_i32, %c0_i32_0 : i32, i32, i32
  }
  func.func @transform_1(%arg0: i32, %arg1: i32) -> (i32, i32) {
    %c0_i32 = arith.constant 0 : i32
    %c0_i32_0 = arith.constant 0 : i32
    %c0_i32_1 = arith.constant 0 : i32
    return %c0_i32, %c0_i32_0 : i32, i32
  }
  func.func @transform_2(%arg0: i32, %arg1: i32) -> (i32, i32) {
    %c0_i32 = arith.constant 0 : i32
    %c0_i32_0 = arith.constant 0 : i32
    %c0_i32_1 = arith.constant 0 : i32
    return %c0_i32, %c0_i32_0 : i32, i32
  }
  func.func @transform_3(%arg0: i32, %arg1: i32) -> (i32, i32) {
    %c0_i32 = arith.constant 0 : i32
    %c0_i32_0 = arith.constant 0 : i32
    %c0_i32_1 = arith.constant 0 : i32
    return %c0_i32, %c0_i32_0 : i32, i32
  }
  func.func @transform_4(%arg0: i32, %arg1: i32) -> (i32, i32) {
    %c0_i32 = arith.constant 0 : i32
    %c0_i32_0 = arith.constant 0 : i32
    %c0_i32_1 = arith.constant 0 : i32
    return %c0_i32, %c0_i32_0 : i32, i32
  }
  func.func @transform_5(%arg0: i32, %arg1: i32) -> (i32, i32, i32) {
    %c0_i32 = arith.constant 0 : i32
    %c0_i32_0 = arith.constant 0 : i32
    return %arg0, %arg1, %c0_i32 : i32, i32, i32
  }
}

</mosaic_0001>

<llo_original>
// kernel: tpu_custom_call.1
$region0: #{tpu_custom_call.1}
  #allocation0 [shape = 'u32[]', space=smem, size = 0x4, offset = 0x4, fixed_abs, tag = 'smem constant byte address 0x4 - core index']
  #allocation1 [shape = 'u32[72,128]{1,0:T(1,128)}', space=vmem, size = 0x9000, scoped, tag = 'internal scratch']
  #allocation2 [shape = 'bf16[8,64]{1,0:T(8,128)(2,1)}', space=vmem, size = 0x800, scoped, tag = 'scratch operand']
  #allocation3 [shape = 'bf16[8,32]{1,0:T(8,128)(2,1)}', space=vmem, size = 0x800, scoped, tag = 'scratch operand']
  #allocation4 [shape = 'bf16[8,32]{1,0:T(8,128)(2,1)}', space=vmem, size = 0x800, scoped, tag = 'scratch operand']
  %s0 = inlined_call_operand.hbm [shape: bf16[2,8,32], index: 0, kind: input, shape index: {}]
  %s1 = inlined_call_operand.hbm [shape: bf16[32,32], index: 1, kind: input, shape index: {}]
  %s2 = inlined_call_operand.hbm [shape: bf16[32,64], index: 2, kind: input, shape index: {}]
  %s3 = inlined_call_operand.hbm [shape: bf16[32,32], index: 3, kind: input, shape index: {}]
  %s4 = inlined_call_operand.vmem [shape: f32[1,32], index: 4, kind: input, shape index: {}]
  %s5 = inlined_call_operand.hbm [shape: f32[2,8,32], index: 5, kind: output, shape index: {}]
  %s6 = sld [smem:[#allocation0]]
  $region73: #{tpu_custom_call.1} parent=0
    _
  %s8 = ssub.s32 1, %s6
  %s9 = scalar_select 0, %s8, %s6
  $region1: #{tpu_custom_call.1} parent=0
    #allocation5 [shape = 'u8[4096]{0}', space=vmem, size = 0x1000, scoped, tag = 'input window, operand 0']
    #allocation6 [shape = 's32[2]{0}', space=sflag, size = 0x8, scoped, tag = 'scoped memory for tpu_custom_call.1']
    #allocation7 [shape = 's32[2]{0}', space=sflag, size = 0x8, scoped, tag = 'scoped memory for tpu_custom_call.1']
    #allocation8 [shape = 'u8[8192]{0}', space=vmem, size = 0x2000, scoped, tag = 'input window, operand 1, single buffered']
    #allocation9 [shape = 's32[1]{0}', space=sflag, size = 0x4, scoped, tag = 'scoped memory for tpu_custom_call.1']
    #allocation10 [shape = 'u8[8192]{0}', space=vmem, size = 0x2000, scoped, tag = 'input window, operand 2, single buffered']
    #allocation11 [shape = 'u8[8192]{0}', space=vmem, size = 0x2000, scoped, tag = 'input window, operand 3, single buffered']
    #allocation12 [shape = 's32[1]{0}', space=sflag, size = 0x4, scoped, tag = 'scoped memory for tpu_custom_call.1']
    #allocation13 [shape = 'u8[8192]{0}', space=vmem, size = 0x2000, scoped, tag = 'output window, operand 0']
    %10 = vsyncpa [#allocation6], 0
    %s11 = scalar_lea.sflag [#allocation6], 1
    %12 = vsyncpa %s11, 0
    %13 = vsyncpa [#allocation9], 0
    %14 = vsyncpa [#allocation12], 0
    %15 = vsyncpa [#allocation7], 0
    %s16 = scalar_lea.sflag [#allocation7], 1
    %17 = vsyncpa %s16, 0
    loop: start=0, step=1, limit=4
    $region2: #{tpu_custom_call.1} parent=1 // loop_pre_header
      _
    $region3: #{tpu_custom_call.1} parent=1 // loop_header
      %s19 = sphi 0, %s23
      %p20 = scmp.ge.s32.totalorder %s19, 4
      %s26 = sphi 0, %s38
      %s27 = sphi 0, %s34
      %s28 = sphi 0, %s26
      %s29 = sphi 0, %s27
      %s30 = sphi 0, %s28
      %s31 = sphi 0, %s29
      %s41 = sphi 0, %s43
      %s44 = sphi 0, %s41
      %s45 = sphi 0, %s44
      %s61 = sphi 0, %s45
      %s65 = sphi 0, %s65
      %s67 = sphi 0, %s65
      %s68 = sphi 0, %s67
      %s82 = sphi 0, %s68
      %s86 = sphi 0, %s86
      %s88 = sphi 0, %s86
      %s89 = sphi 0, %s88
      %s103 = sphi 0, %s89
      %s107 = sphi 0, %s107
      %s109 = sphi 0, %s107
      %s110 = sphi 0, %s109
      %s124 = sphi 0, %s110
      %s128 = sphi 0, %s128
      %s130 = sphi 0, %s128
      %s131 = sphi 0, %s130
      %s145 = sphi 0, %s131
      %s153 = sphi 0, %s155
      %s156 = sphi 0, %s153
      %s157 = sphi 0, %s156
      %s173 = sphi 0, %s157
    $region4: #{tpu_custom_call.1} parent=1 // loop_header_branch
      %22 = sbr.rel (%p20) target = $region8
    $region5: #{tpu_custom_call.1} parent=1 // loop_body
      %s24 = ssub.s32 %s19, 1
      %s25 = ssub.s32 %s19, 2
      %s32 = sadd.s32 1, %s27
      %p33 = scmp.ge.s32.totalorder %s32, 1
      %s34 = scalar_select %p33, 0, %s32
      %s35 = sadd.s32 1, %s26
      %s36 = scalar_select %p33, %s35, %s26
      %p37 = scmp.ge.s32.totalorder %s36, 2
      %s38 = scalar_select %p37, 0, %s36
      %s39 = ssub.s32 %s26, %s38
      %p40 = scmp.eq.s32.totalorder %s39, 0
      %s42 = sadd.s32 %s41, 1
      %s43 = scalar_select %p40, %s41, %s42
      %p46 = pneg %p40
      %p47 = scmp.eq.s32.totalorder %s19, 1
      %p48 = por %p46, %p47
      %p49 = scmp.ne.s32.totalorder %s41, %s44
      %p50 = scmp.eq.s32.totalorder %s19, 0
      %p51 = por %p49, %p50
      %p52 = scmp.ne.s32.totalorder %s41, %s44
      %p53 = scmp.eq.s32.totalorder %s24, 1
      %p54 = por %p52, %p53
      %p55 = scmp.ne.s32.totalorder %s44, %s45
      %p56 = scmp.eq.s32.totalorder %s24, 0
      %p57 = por %p55, %p56
      %p58 = scmp.ne.s32.totalorder %s44, %s45
      %p59 = scmp.eq.s32.totalorder %s25, 1
      %p60 = por %p58, %p59
      %p62 = scmp.ne.s32.totalorder %s45, %s61
      %p63 = scmp.eq.s32.totalorder %s25, 0
      %p64 = por %p62, %p63
      %s66 = sadd.s32 %s65, 1
      %p69 = scmp.eq.s32.totalorder %s19, 1
      %p70 = scmp.ne.s32.totalorder %s65, %s67
      %p71 = scmp.eq.s32.totalorder %s19, 0
      %p72 = por %p70, %p71
      %p73 = scmp.ne.s32.totalorder %s65, %s67
      %p74 = scmp.eq.s32.totalorder %s24, 1
      %p75 = por %p73, %p74
      %p76 = scmp.ne.s32.totalorder %s67, %s68
      %p77 = scmp.eq.s32.totalorder %s24, 0
      %p78 = por %p76, %p77
      %p79 = scmp.ne.s32.totalorder %s67, %s68
      %p80 = scmp.eq.s32.totalorder %s25, 1
      %p81 = por %p79, %p80
      %p83 = scmp.ne.s32.totalorder %s68, %s82
      %p84 = scmp.eq.s32.totalorder %s25, 0
      %p85 = por %p83, %p84
      %s87 = sadd.s32 %s86, 1
      %p90 = scmp.eq.s32.totalorder %s19, 1
      %p91 = scmp.ne.s32.totalorder %s86, %s88
      %p92 = scmp.eq.s32.totalorder %s19, 0
      %p93 = por %p91, %p92
      %p94 = scmp.ne.s32.totalorder %s86, %s88
      %p95 = scmp.eq.s32.totalorder %s24, 1
      %p96 = por %p94, %p95
      %p97 = scmp.ne.s32.totalorder %s88, %s89
      %p98 = scmp.eq.s32.totalorder %s24, 0
      %p99 = por %p97, %p98
      %p100 = scmp.ne.s32.totalorder %s88, %s89
      %p101 = scmp.eq.s32.totalorder %s25, 1
      %p102 = por %p100, %p101
      %p104 = scmp.ne.s32.totalorder %s89, %s103
      %p105 = scmp.eq.s32.totalorder %s25, 0
      %p106 = por %p104, %p105
      %s108 = sadd.s32 %s107, 1
      %p111 = scmp.eq.s32.totalorder %s19, 1
      %p112 = scmp.ne.s32.totalorder %s107, %s109
      %p113 = scmp.eq.s32.totalorder %s19, 0
      %p114 = por %p112, %p113
      %p115 = scmp.ne.s32.totalorder %s107, %s109
      %p116 = scmp.eq.s32.totalorder %s24, 1
      %p117 = por %p115, %p116
      %p118 = scmp.ne.s32.totalorder %s109, %s110
      %p119 = scmp.eq.s32.totalorder %s24, 0
      %p120 = por %p118, %p119
      %p121 = scmp.ne.s32.totalorder %s109, %s110
      %p122 = scmp.eq.s32.totalorder %s25, 1
      %p123 = por %p121, %p122
      %p125 = scmp.ne.s32.totalorder %s110, %s124
      %p126 = scmp.eq.s32.totalorder %s25, 0
      %p127 = por %p125, %p126
      %s129 = sadd.s32 %s128, 1
      %p132 = scmp.eq.s32.totalorder %s19, 1
      %p133 = scmp.ne.s32.totalorder %s128, %s130
      %p134 = scmp.eq.s32.totalorder %s19, 0
      %p135 = por %p133, %p134
      %p136 = scmp.ne.s32.totalorder %s128, %s130
      %p137 = scmp.eq.s32.totalorder %s24, 1
      %p138 = por %p136, %p137
      %p139 = scmp.ne.s32.totalorder %s130, %s131
      %p140 = scmp.eq.s32.totalorder %s24, 0
      %p141 = por %p139, %p140
      %p142 = scmp.ne.s32.totalorder %s130, %s131
      %p143 = scmp.eq.s32.totalorder %s25, 1
      %p144 = por %p142, %p143
      %p146 = scmp.ne.s32.totalorder %s131, %s145
      %p147 = scmp.eq.s32.totalorder %s25, 0
      %p148 = por %p146, %p147
      %s149 = ssub.s32 %s26, %s38
      %s150 = ssub.s32 %s27, %s34
      %s151 = sor.u32 %s149, %s150
      %p152 = scmp.eq.s32.totalorder %s151, 0
      %s154 = sadd.s32 %s153, 1
      %s155 = scalar_select %p152, %s153, %s154
      %p158 = pneg %p152
      %p159 = scmp.eq.s32.totalorder %s19, 1
      %p160 = por %p158, %p159
      %p161 = scmp.ne.s32.totalorder %s153, %s156
      %p162 = scmp.eq.s32.totalorder %s19, 0
      %p163 = por %p161, %p162
      %p164 = scmp.ne.s32.totalorder %s153, %s156
      %p165 = scmp.eq.s32.totalorder %s24, 1
      %p166 = por %p164, %p165
      %p167 = scmp.ne.s32.totalorder %s156, %s157
      %p168 = scmp.eq.s32.totalorder %s24, 0
      %p169 = por %p167, %p168
      %p170 = scmp.ne.s32.totalorder %s156, %s157
      %p171 = scmp.eq.s32.totalorder %s25, 1
      %p172 = por %p170, %p171
      %p174 = scmp.ne.s32.totalorder %s157, %s173
      %p175 = scmp.eq.s32.totalorder %s25, 0
      %p176 = por %p174, %p175
      %p177 = scmp.le.s32.totalorder 1, %s19
      %p178 = scmp.lt.s32.totalorder %s19, 3
      %p179 = pnand %p177, %p178
      %p180 = pneg %p179
      // Predicated region
      $region9: #{tpu_custom_call.1} parent=5 // pred_check
        _
      $region10: #{tpu_custom_call.1} parent=5 // pred_check_branch
        %182 = sbr.rel (%p179) target = $region12
      $region11: #{tpu_custom_call.1} parent=5 // pred_region
        %s183 = ssub.s32 %s19, 1
        // Predicated region
        $region13: #{tpu_custom_call.1} parent=11 // pred_check
          %p184 = pneg %p78
        $region14: #{tpu_custom_call.1} parent=11 // pred_check_branch
          %186 = sbr.rel (%p184) target = $region16
        $region15: #{tpu_custom_call.1} parent=11 // pred_region
          %188 = vsyncadd [#allocation9], 0
          %s189 = sshll.u32 %s1, 4
          %s190 = int_to_ptr.hbm [resolvable:$true] %s189
          %s191 = sshll.u32 [#allocation8], 4
          %s192 = int_to_ptr.vmem [resolvable:$true] %s191
          %197 = dma.hbm_to_vmem [thread:$0]  %s190, 256, %s192, [#allocation9], 64, 64, 4
        $region16: #{tpu_custom_call.1} parent=11 // pred_fallthru
          _
        // Predicated region
        $region17: #{tpu_custom_call.1} parent=11 // pred_check
          %p198 = pneg %p99
        $region18: #{tpu_custom_call.1} parent=11 // pred_check_branch
          %200 = sbr.rel (%p198) target = $region20
        $region19: #{tpu_custom_call.1} parent=11 // pred_region
          %202 = vsyncadd [#allocation9], 0
          %s203 = sshll.u32 %s2, 4
          %s204 = int_to_ptr.hbm [resolvable:$true] %s203
          %s205 = sshll.u32 [#allocation10], 4
          %s206 = int_to_ptr.vmem [resolvable:$true] %s205
          %211 = dma.hbm_to_vmem [thread:$0]  %s204, 256, %s206, [#allocation9], 64, 64, 4
        $region20: #{tpu_custom_call.1} parent=11 // pred_fallthru
          _
        // Predicated region
        $region21: #{tpu_custom_call.1} parent=11 // pred_check
          %p212 = pneg %p120
        $region22: #{tpu_custom_call.1} parent=11 // pred_check_branch
          %214 = sbr.rel (%p212) target = $region24
        $region23: #{tpu_custom_call.1} parent=11 // pred_region
          %216 = vsyncadd [#allocation12], 0
          %s217 = sshll.u32 %s3, 4
          %s218 = int_to_ptr.hbm [resolvable:$true] %s217
          %s219 = sshll.u32 [#allocation11], 4
          %s220 = int_to_ptr.vmem [resolvable:$true] %s219
          %225 = dma.hbm_to_vmem [thread:$0]  %s218, 256, %s220, [#allocation12], 64, 64, 4
        $region24: #{tpu_custom_call.1} parent=11 // pred_fallthru
          _
        // Predicated region
        $region25: #{tpu_custom_call.1} parent=11 // pred_check
          %p226 = pneg %p141
        $region26: #{tpu_custom_call.1} parent=11 // pred_check_branch
          %228 = sbr.rel (%p226) target = $region28
        $region27: #{tpu_custom_call.1} parent=11 // pred_region
          _
        $region28: #{tpu_custom_call.1} parent=11 // pred_fallthru
          _
      $region12: #{tpu_custom_call.1} parent=5 // pred_fallthru
        _
      %p229 = scmp.lt.s32.totalorder %s19, 2
      // Predicated region
      $region29: #{tpu_custom_call.1} parent=5 // pred_check
        %p230 = pneg %p229
      $region30: #{tpu_custom_call.1} parent=5 // pred_check_branch
        %232 = sbr.rel (%p230) target = $region32
      $region31: #{tpu_custom_call.1} parent=5 // pred_region
        // Predicated region
        $region33: #{tpu_custom_call.1} parent=31 // pred_check
          %p233 = pneg %p51
        $region34: #{tpu_custom_call.1} parent=31 // pred_check_branch
          %235 = sbr.rel (%p233) target = $region36
        $region35: #{tpu_custom_call.1} parent=31 // pred_region
          %s236 = sand.u32 %s41, 1
          %s237 = scalar_lea.sflag [#allocation6], %s236
          %s238 = sand.u32 %s41, 1
          %s239 = smul.addr %s238, 4
          %s240 = scalar_lea.vmem [#allocation5], %s239
          %242 = vsyncadd %s237, 0
          %s243 = smul.addr %s26, 4
          %s244 = scalar_lea.hbm %s0, %s243
          %s246 = sshll.u32 %s244, 4
          %s247 = int_to_ptr.hbm [resolvable:$true] %s246
          %s248 = sshll.u32 %s240, 4
          %s249 = int_to_ptr.vmem [resolvable:$true] %s248
          %251 = dma.hbm_to_vmem [thread:$0]  %s247, 64, %s249, %s237
        $region36: #{tpu_custom_call.1} parent=31 // pred_fallthru
          _
      $region32: #{tpu_custom_call.1} parent=5 // pred_fallthru
        _
      %p252 = scmp.le.s32.totalorder 1, %s19
      %p253 = scmp.lt.s32.totalorder %s19, 3
      %p254 = pnand %p252, %p253
      %p255 = pneg %p254
      // Predicated region
      $region37: #{tpu_custom_call.1} parent=5 // pred_check
        _
      $region38: #{tpu_custom_call.1} parent=5 // pred_check_branch
        %257 = sbr.rel (%p254) target = $region40
      $region39: #{tpu_custom_call.1} parent=5 // pred_region
        %s258 = ssub.s32 %s19, 1
        %s259 = sand.u32 %s44, 1
        %s260 = scalar_lea.sflag [#allocation6], %s259
        %s261 = sand.u32 %s44, 1
        %s262 = smul.addr %s261, 4
        %s263 = scalar_lea.vmem [#allocation5], %s262
        // Predicated region
        $region41: #{tpu_custom_call.1} parent=39 // pred_check
          %p264 = pneg %p57
        $region42: #{tpu_custom_call.1} parent=39 // pred_check_branch
          %266 = sbr.rel (%p264) target = $region44
        $region43: #{tpu_custom_call.1} parent=39 // pred_region
          %268 = dma.done %s260, 64
        $region44: #{tpu_custom_call.1} parent=39 // pred_fallthru
          _
        // Predicated region
        $region45: #{tpu_custom_call.1} parent=39 // pred_check
          %p269 = pneg %p78
        $region46: #{tpu_custom_call.1} parent=39 // pred_check_branch
          %271 = sbr.rel (%p269) target = $region48
        $region47: #{tpu_custom_call.1} parent=39 // pred_region
          %273 = dma.done [#allocation9], 256
        $region48: #{tpu_custom_call.1} parent=39 // pred_fallthru
          _
        // Predicated region
        $region49: #{tpu_custom_call.1} parent=39 // pred_check
          %p274 = pneg %p99
        $region50: #{tpu_custom_call.1} parent=39 // pred_check_branch
          %276 = sbr.rel (%p274) target = $region52
        $region51: #{tpu_custom_call.1} parent=39 // pred_region
          %278 = dma.done [#allocation9], 256
        $region52: #{tpu_custom_call.1} parent=39 // pred_fallthru
          _
        // Predicated region
        $region53: #{tpu_custom_call.1} parent=39 // pred_check
          %p279 = pneg %p120
        $region54: #{tpu_custom_call.1} parent=39 // pred_check_branch
          %281 = sbr.rel (%p279) target = $region56
        $region55: #{tpu_custom_call.1} parent=39 // pred_region
          %283 = dma.done [#allocation12], 256
        $region56: #{tpu_custom_call.1} parent=39 // pred_fallthru
          _
        %s284 = sand.u32 %s44, 1
        %s285 = scalar_lea.sflag [#allocation6], %s284
        %s286 = sand.u32 %s44, 1
        %s287 = smul.addr %s286, 4
        %s288 = scalar_lea.vmem [#allocation5], %s287
        %p289 = pneg %p57
        %p290 = pneg %p54
        %p291 = pneg %p78
        %p292 = pneg %p75
        %p293 = pneg %p99
        %p294 = pneg %p96
        %p295 = pneg %p120
        %p296 = pneg %p117
        %p297 = pneg %p141
        %p298 = pneg %p138
        %p299 = pneg %p169
        %p300 = pneg %p166
        %s301 = sand.u32 %s156, 1
        %s302 = scalar_lea.sflag [#allocation7], %s301
        %s303 = sand.u32 %s156, 1
        %s304 = smul.addr %s303, 8
        %s305 = scalar_lea.vmem [#allocation13], %s304
        %p307 = scmp.eq.s32.totalorder %s29, 0
        // Predicated region
        $region57: #{tpu_custom_call.1} parent=39 // pred_check
          %p308 = pneg %p307
        $region58: #{tpu_custom_call.1} parent=39 // pred_check_branch
          %310 = sbr.rel (%p308) target = $region60
        $region59: #{tpu_custom_call.1} parent=39 // pred_region
          %v311 = vld [vmem:[%s263] sm:$0xf]
          %v312 = vld [vmem:[#allocation10] sm:$0xf]
          %v313 = vld [vmem:[#allocation10 + $0x4] sm:$0xf]
          %v314 = vld [vmem:[#allocation10 + $0x8] sm:$0xf]
          %v315 = vld [vmem:[#allocation10 + $0xc] sm:$0xf]
          %v320 = vunpack.c.l.b16 %v312
          %v321 = vunpack.c.l.b16 %v313
          %v322 = vunpack.c.l.b16 %v314
          %v323 = vunpack.c.l.b16 %v315
          %v324 = vpack.c.b16 %v321, %v320
          %v325 = vpack.c.b16 %v323, %v322
          %vm328 = vcmask 261120
          %v330 = vsel %vm328, %v311, 0
          %332 = vmatpush.bf16.msra.mxu0 0
          %333 = vmatpush.bf16.msra.mxu0 0
          %334 = vmatpush.bf16.msra.mxu0 0
          %335 = vmatpush.bf16.msra.mxu0 0
          %336 = vmatpush.bf16.msra.mxu0 0
          %337 = vmatpush.bf16.msra.mxu0 0
          %338 = vmatpush.bf16.msra.mxu0 %v325
          %339 = vmatpush.bf16.msra.mxu0 %v324
          %340 = vmatmul.bf16.gmra.mxu0 %v330
          %v341 = vpop.f32.mrf.mxu0
          %v342 = vadd.f32 0.0, %v341
          %v343 = vpop.f32.mrf.mxu0
          %344 = vdwg.mxu0
          %v345 = vpack.c.bf16 %v342, %v342
          %vm346 = vcmask 519168
          %347 = vst.msk [vmem:[#allocation2] sm:$0xf] %vm346, %v345
        $region60: #{tpu_custom_call.1} parent=39 // pred_fallthru
          _
        %s348 = smul.u32 %s29, 8
        %s349 = sshra.s32 %s348, 3
        %s350 = sand.u32 %s348, 7
        %s351 = smul.addr %s349, 4
        %s352 = scalar_lea.vmem %s263, %s351 [#allocation5]
        %v353 = vld [vmem:[%s352] sm:$0xf]
        %v354 = vld [vmem:[#allocation8] sm:$0xf]
        %v355 = vld [vmem:[#allocation8 + $0x4] sm:$0xf]
        %v356 = vld [vmem:[#allocation8 + $0x8] sm:$0xf]
        %v357 = vld [vmem:[#allocation8 + $0xc] sm:$0xf]
        %v362 = vunpack.c.l.b16 %v354
        %v363 = vunpack.c.l.b16 %v355
        %v364 = vunpack.c.l.b16 %v356
        %v365 = vunpack.c.l.b16 %v357
        %v366 = vpack.c.b16 %v363, %v362
        %v367 = vpack.c.b16 %v365, %v364
        %vm370 = vcmask 261120
        %v372 = vsel %vm370, %v353, 0
        %374 = vmatpush.bf16.msra.mxu0 0
        %375 = vmatpush.bf16.msra.mxu0 0
        %376 = vmatpush.bf16.msra.mxu0 0
        %377 = vmatpush.bf16.msra.mxu0 0
        %378 = vmatpush.bf16.msra.mxu0 0
        %379 = vmatpush.bf16.msra.mxu0 0
        %380 = vmatpush.bf16.msra.mxu0 %v367
        %381 = vmatpush.bf16.msra.mxu0 %v366
        %382 = vmatmul.bf16.gmra.mxu0 %v372
        %v383 = vpop.f32.mrf.mxu0
        %v384 = vadd.f32 0.0, %v383
        %v385 = vpop.f32.mrf.mxu0
        %386 = vdwg.mxu0
        %v387 = vpack.c.bf16 %v384, %v384
        %vm388 = vcmask 257024
        %389 = vst.msk [vmem:[#allocation3] sm:$0xf] %vm388, %v387
        %v390 = vld [vmem:[#allocation3] sm:$0xf]
        %v391 = vld [vmem:[#allocation2] sm:$0xf]
        %vm392 = vcmask 64512
        %v394 = vsel %vm392, %v390, 0
        %v397 = vsel %vm392, %v391, 0
        %399 = vmatpush.bf16.xpose.msra.mxu0 0
        %400 = vmatpush.bf16.xpose.msra.mxu0 0
        %401 = vmatpush.bf16.xpose.msra.mxu0 0
        %402 = vmatpush.bf16.xpose.msra.mxu0 0
        %403 = vmatpush.bf16.xpose.msra.mxu0 0
        %404 = vmatpush.bf16.xpose.msra.mxu0 0
        %405 = vmatpush.bf16.xpose.msra.mxu0 0
        %406 = vmatpush.bf16.xpose.msra.mxu0 %v397
        %407 = vmatmul.bf16.gmra.mxu0 %v394
        %v408 = vpop.f32.mrf.mxu0
        %v409 = vadd.f32 0.0, %v408
        %v410 = vpop.f32.mrf.mxu0
        %411 = vdwg.mxu0
        %v412 = vsel %vm392, %v409, -inf
        %413 = vmax.xlane.f32.xlu0 %v412
        %v414 = vpop.xlane.xlu0 %413
        %v415 = vsub.f32 %v409, %v414
        %v416 = vmul.f32 %v415, 1.442695
        %v417 = vpow.pop %v416
        %v418 = vsel %vm392, %v417, 0.0
        %419 = vadd.xlane.f32.xlu0 %v418
        %v420 = vpop.xlane.xlu0 %419
        %v421 = vrcp.pop %v420
        %v422 = vmul.f32 %v417, %v421
        %v423 = vpack.c.bf16 %v422, %v422
        %v425 = vunpack.c.l.b16 %v391
        %v426 = vpack.c.b16 %v425, %v425
        %427 = vrot.lane.b32.xlu0 %v426, 96
        %v428 = vpop.permute.xlu0 %427
        %v430 = vsel %vm392, %v423, 0
        %vm432 = vcmask 1043456
        %v434 = vsel %vm432, %v428, 0
        %436 = vmatpush.bf16.msra.mxu0 0
        %437 = vmatpush.bf16.msra.mxu0 0
        %438 = vmatpush.bf16.msra.mxu0 0
        %439 = vmatpush.bf16.msra.mxu0 0
        %440 = vmatpush.bf16.msra.mxu0 0
        %441 = vmatpush.bf16.msra.mxu0 0
        %442 = vmatpush.bf16.msra.mxu0 0
        %443 = vmatpush.bf16.msra.mxu0 %v434
        %444 = vmatmul.bf16.gmra.mxu0 %v430
        %v445 = vpop.f32.mrf.mxu0
        %v446 = vadd.f32 0.0, %v445
        %v447 = vpop.f32.mrf.mxu0
        %448 = vdwg.mxu0
        %v450 = vunpack.c.l.b16 %v390
        %v451 = vpack.c.b16 %v450, %v450
        %452 = vrot.lane.b32.xlu0 %v451, 120
        %v453 = vpop.permute.xlu0 %452
        %454 = vrot.lane.b32.xlu0 %v426, 120
        %v455 = vpop.permute.xlu0 %454
        %v457 = vsel %vm392, %v453, 0
        %v460 = vsel %vm392, %v455, 0
        %462 = vmatpush.bf16.xpose.msra.mxu0 0
        %463 = vmatpush.bf16.xpose.msra.mxu0 0
        %464 = vmatpush.bf16.xpose.msra.mxu0 0
        %465 = vmatpush.bf16.xpose.msra.mxu0 0
        %466 = vmatpush.bf16.xpose.msra.mxu0 0
        %467 = vmatpush.bf16.xpose.msra.mxu0 0
        %468 = vmatpush.bf16.xpose.msra.mxu0 0
        %469 = vmatpush.bf16.xpose.msra.mxu0 %v460
        %470 = vmatmul.bf16.gmra.mxu0 %v457
        %v471 = vpop.f32.mrf.mxu0
        %v472 = vadd.f32 0.0, %v471
        %v473 = vpop.f32.mrf.mxu0
        %474 = vdwg.mxu0
        %v475 = vsel %vm392, %v472, -inf
        %476 = vmax.xlane.f32.xlu0 %v475
        %v477 = vpop.xlane.xlu0 %476
        %v478 = vsub.f32 %v472, %v477
        %v479 = vmul.f32 %v478, 1.442695
        %v480 = vpow.pop %v479
        %v481 = vsel %vm392, %v480, 0.0
        %482 = vadd.xlane.f32.xlu0 %v481
        %v483 = vpop.xlane.xlu0 %482
        %v484 = vrcp.pop %v483
        %v485 = vmul.f32 %v480, %v484
        %v486 = vpack.c.bf16 %v485, %v485
        %487 = vrot.lane.b32.xlu0 %v426, 88
        %v488 = vpop.permute.xlu0 %487
        %v490 = vsel %vm392, %v486, 0
        %v493 = vsel %vm432, %v488, 0
        %495 = vmatpush.bf16.msra.mxu0 0
        %496 = vmatpush.bf16.msra.mxu0 0
        %497 = vmatpush.bf16.msra.mxu0 0
        %498 = vmatpush.bf16.msra.mxu0 0
        %499 = vmatpush.bf16.msra.mxu0 0
        %500 = vmatpush.bf16.msra.mxu0 0
        %501 = vmatpush.bf16.msra.mxu0 0
        %502 = vmatpush.bf16.msra.mxu0 %v493
        %503 = vmatmul.bf16.gmra.mxu0 %v490
        %v504 = vpop.f32.mrf.mxu0
        %v505 = vadd.f32 0.0, %v504
        %v506 = vpop.f32.mrf.mxu0
        %507 = vdwg.mxu0
        %508 = vrot.lane.b32.xlu0 %v451, 112
        %v509 = vpop.permute.xlu0 %508
        %510 = vrot.lane.b32.xlu0 %v426, 112
        %v511 = vpop.permute.xlu0 %510
        %v513 = vsel %vm392, %v509, 0
        %v516 = vsel %vm392, %v511, 0
        %518 = vmatpush.bf16.xpose.msra.mxu0 0
        %519 = vmatpush.bf16.xpose.msra.mxu0 0
        %520 = vmatpush.bf16.xpose.msra.mxu0 0
        %521 = vmatpush.bf16.xpose.msra.mxu0 0
        %522 = vmatpush.bf16.xpose.msra.mxu0 0
        %523 = vmatpush.bf16.xpose.msra.mxu0 0
        %524 = vmatpush.bf16.xpose.msra.mxu0 0
        %525 = vmatpush.bf16.xpose.msra.mxu0 %v516
        %526 = vmatmul.bf16.gmra.mxu0 %v513
        %v527 = vpop.f32.mrf.mxu0
        %v528 = vadd.f32 0.0, %v527
        %v529 = vpop.f32.mrf.mxu0
        %530 = vdwg.mxu0
        %v531 = vsel %vm392, %v528, -inf
        %532 = vmax.xlane.f32.xlu0 %v531
        %v533 = vpop.xlane.xlu0 %532
        %v534 = vsub.f32 %v528, %v533
        %v535 = vmul.f32 %v534, 1.442695
        %v536 = vpow.pop %v535
        %v537 = vsel %vm392, %v536, 0.0
        %538 = vadd.xlane.f32.xlu0 %v537
        %v539 = vpop.xlane.xlu0 %538
        %v540 = vrcp.pop %v539
        %v541 = vmul.f32 %v536, %v540
        %v542 = vpack.c.bf16 %v541, %v541
        %543 = vrot.lane.b32.xlu0 %v426, 80
        %v544 = vpop.permute.xlu0 %543
        %v546 = vsel %vm392, %v542, 0
        %v549 = vsel %vm432, %v544, 0
        %551 = vmatpush.bf16.msra.mxu0 0
        %552 = vmatpush.bf16.msra.mxu0 0
        %553 = vmatpush.bf16.msra.mxu0 0
        %554 = vmatpush.bf16.msra.mxu0 0
        %555 = vmatpush.bf16.msra.mxu0 0
        %556 = vmatpush.bf16.msra.mxu0 0
        %557 = vmatpush.bf16.msra.mxu0 0
        %558 = vmatpush.bf16.msra.mxu0 %v549
        %559 = vmatmul.bf16.gmra.mxu0 %v546
        %v560 = vpop.f32.mrf.mxu0
        %v561 = vadd.f32 0.0, %v560
        %v562 = vpop.f32.mrf.mxu0
        %563 = vdwg.mxu0
        %564 = vrot.lane.b32.xlu0 %v451, 104
        %v565 = vpop.permute.xlu0 %564
        %566 = vrot.lane.b32.xlu0 %v426, 104
        %v567 = vpop.permute.xlu0 %566
        %v569 = vsel %vm392, %v565, 0
        %v572 = vsel %vm392, %v567, 0
        %574 = vmatpush.bf16.xpose.msra.mxu0 0
        %575 = vmatpush.bf16.xpose.msra.mxu0 0
        %576 = vmatpush.bf16.xpose.msra.mxu0 0
        %577 = vmatpush.bf16.xpose.msra.mxu0 0
        %578 = vmatpush.bf16.xpose.msra.mxu0 0
        %579 = vmatpush.bf16.xpose.msra.mxu0 0
        %580 = vmatpush.bf16.xpose.msra.mxu0 0
        %581 = vmatpush.bf16.xpose.msra.mxu0 %v572
        %582 = vmatmul.bf16.gmra.mxu0 %v569
        %v583 = vpop.f32.mrf.mxu0
        %v584 = vadd.f32 0.0, %v583
        %v585 = vpop.f32.mrf.mxu0
        %586 = vdwg.mxu0
        %v587 = vsel %vm392, %v584, -inf
        %588 = vmax.xlane.f32.xlu0 %v587
        %v589 = vpop.xlane.xlu0 %588
        %v590 = vsub.f32 %v584, %v589
        %v591 = vmul.f32 %v590, 1.442695
        %v592 = vpow.pop %v591
        %v593 = vsel %vm392, %v592, 0.0
        %594 = vadd.xlane.f32.xlu0 %v593
        %v595 = vpop.xlane.xlu0 %594
        %v596 = vrcp.pop %v595
        %v597 = vmul.f32 %v592, %v596
        %v598 = vpack.c.bf16 %v597, %v597
        %599 = vrot.lane.b32.xlu0 %v426, 72
        %v600 = vpop.permute.xlu0 %599
        %v602 = vsel %vm392, %v598, 0
        %v605 = vsel %vm432, %v600, 0
        %607 = vmatpush.bf16.msra.mxu0 0
        %608 = vmatpush.bf16.msra.mxu0 0
        %609 = vmatpush.bf16.msra.mxu0 0
        %610 = vmatpush.bf16.msra.mxu0 0
        %611 = vmatpush.bf16.msra.mxu0 0
        %612 = vmatpush.bf16.msra.mxu0 0
        %613 = vmatpush.bf16.msra.mxu0 0
        %614 = vmatpush.bf16.msra.mxu0 %v605
        %615 = vmatmul.bf16.gmra.mxu0 %v602
        %v616 = vpop.f32.mrf.mxu0
        %v617 = vadd.f32 0.0, %v616
        %v618 = vpop.f32.mrf.mxu0
        %619 = vdwg.mxu0
        %621 = vrot.lane.b32.xlu0 %v505, 8
        %v622 = vpop.permute.xlu0 %621
        %625 = vrot.lane.b32.xlu0 %v561, 16
        %v626 = vpop.permute.xlu0 %625
        %629 = vrot.lane.b32.xlu0 %v617, 24
        %v630 = vpop.permute.xlu0 %629
        %v632 = vsel %vm392, %v446, %v622
        %vm633 = vcmask 130048
        %v634 = vsel %vm633, %v632, %v626
        %vm635 = vcmask 195584
        %v636 = vsel %vm635, %v634, %v630
        %v637 = vpack.c.bf16 %v636, %v636
        %638 = vst.msk [vmem:[#allocation4] sm:$0xf] %vm388, %v637
        %v639 = vld [vmem:[#allocation4] sm:$0xf]
        %v640 = vld [vmem:[#allocation11] sm:$0xf]
        %v641 = vld [vmem:[#allocation11 + $0x4] sm:$0xf]
        %v642 = vld [vmem:[#allocation11 + $0x8] sm:$0xf]
        %v643 = vld [vmem:[#allocation11 + $0xc] sm:$0xf]
        %v644 = vld [vmem:[%s4] sm:$0x1]
        %v646 = vperm.slane %v644, 0
        %v652 = vunpack.c.l.b16 %v640
        %v653 = vunpack.c.l.b16 %v641
        %v654 = vunpack.c.l.b16 %v642
        %v655 = vunpack.c.l.b16 %v643
        %v656 = vpack.c.b16 %v653, %v652
        %v657 = vpack.c.b16 %v655, %v654
        %v661 = vsel %vm370, %v639, 0
        %663 = vmatpush.bf16.msra.mxu0 0
        %664 = vmatpush.bf16.msra.mxu0 0
        %665 = vmatpush.bf16.msra.mxu0 0
        %666 = vmatpush.bf16.msra.mxu0 0
        %667 = vmatpush.bf16.msra.mxu0 0
        %668 = vmatpush.bf16.msra.mxu0 0
        %669 = vmatpush.bf16.msra.mxu0 %v657
        %670 = vmatpush.bf16.msra.mxu0 %v656
        %671 = vmatmul.bf16.gmra.mxu0 %v661
        %v672 = vpop.f32.mrf.mxu0
        %v673 = vadd.f32 %v646, %v672
        %v674 = vpop.f32.mrf.mxu0
        %675 = vdwg.mxu0
        %676 = vst.msk [vmem:[%s305] sm:$0xff] %vm370, %v673
        %s677 = sand.u32 %s156, 1
        %s678 = scalar_lea.sflag [#allocation7], %s677
        %s679 = sand.u32 %s156, 1
        %s680 = smul.addr %s679, 8
        %s681 = scalar_lea.vmem [#allocation13], %s680
        // Predicated region
        $region61: #{tpu_custom_call.1} parent=39 // pred_check
          %p682 = pneg %p166
        $region62: #{tpu_custom_call.1} parent=39 // pred_check_branch
          %684 = sbr.rel (%p682) target = $region64
        $region63: #{tpu_custom_call.1} parent=39 // pred_region
          %686 = vsyncadd %s678, 0
          %s687 = sadd.s32 %s29, %s28
          %s688 = smul.addr %s687, 8
          %s689 = scalar_lea.hbm %s5, %s688
          %s691 = sshll.u32 %s681, 4
          %s692 = int_to_ptr.vmem [resolvable:$true] %s691
          %s693 = sshll.u32 %s689, 4
          %s694 = int_to_ptr.hbm [resolvable:$true] %s693
          %696 = dma.vmem_to_hbm [thread:$0]  %s692, 128, %s694, %s678
        $region64: #{tpu_custom_call.1} parent=39 // pred_fallthru
          _
      $region40: #{tpu_custom_call.1} parent=5 // pred_fallthru
        _
      %p697 = scmp.le.s32.totalorder 2, %s19
      // Predicated region
      $region65: #{tpu_custom_call.1} parent=5 // pred_check
        %p698 = pneg %p697
      $region66: #{tpu_custom_call.1} parent=5 // pred_check_branch
        %700 = sbr.rel (%p698) target = $region68
      $region67: #{tpu_custom_call.1} parent=5 // pred_region
        %s701 = ssub.s32 %s19, 2
        // Predicated region
        $region69: #{tpu_custom_call.1} parent=67 // pred_check
          %p702 = pneg %p172
        $region70: #{tpu_custom_call.1} parent=67 // pred_check_branch
          %704 = sbr.rel (%p702) target = $region72
        $region71: #{tpu_custom_call.1} parent=67 // pred_region
          %s705 = sand.u32 %s157, 1
          %s706 = scalar_lea.sflag [#allocation7], %s705
          %s707 = sand.u32 %s157, 1
          %s708 = smul.addr %s707, 8
          %s709 = scalar_lea.vmem [#allocation13], %s708
          %711 = dma.done %s706, 128
        $region72: #{tpu_custom_call.1} parent=67 // pred_fallthru
          _
      $region68: #{tpu_custom_call.1} parent=5 // pred_fallthru
        _
    $region6: #{tpu_custom_call.1} parent=1 // loop_footer
      %s23 = sadd.s32 1, %s19
    $region7: #{tpu_custom_call.1} parent=1 // loop_footer_branch
      %18 = sbr.rel target = $region3
    $region8: #{tpu_custom_call.1} parent=1 // loop_exit
      _
    %712 = vsyncpa [#allocation6], 1
    %s713 = scalar_lea.sflag [#allocation6], 1
    %714 = vsyncpa %s713, 1
    %715 = vsyncpa [#allocation9], 1
    %716 = vsyncpa [#allocation12], 1
    %717 = vsyncpa [#allocation7], 1
    %s718 = scalar_lea.sflag [#allocation7], 1
    %719 = vsyncpa %s718, 1

</llo_original>
